<compile_context>
chip_gen: v5e
topology: v5e:2x2
jax: 0.10.0
libtpu: 0.0.40
codegen_flags: <defaults>
</compile_context>

<pallas_src>
import functools

import jax
import jax.numpy as jnp
from jax import lax
from jax.experimental import pallas as pl
from jax.experimental.pallas import tpu as pltpu


# ----------------------------------------------------------------------------
# Pallas kernels: (optional residual add +) LayerNorm over the last axis
# ----------------------------------------------------------------------------
def _ln_body(x, gamma, beta, *, eps, feature, torch_style):
    mean = jnp.mean(x, axis=-1, keepdims=True)
    diff = x - mean
    ss = jnp.sum(diff * diff, axis=-1, keepdims=True)          # (rows, 1)
    if torch_style:
        # torch.std default: unbiased (ddof=1); eps added to std, not variance
        var = ss * jnp.float32(1.0 / (feature - 1))
        denom = jnp.sqrt(var) + jnp.float32(eps)
        inv = pl.reciprocal(denom, approx=True)                 # EUP slot
        inv = inv * (jnp.float32(2.0) - denom * inv)            # Newton step -> f32 accuracy
    else:
        # torch.nn.LayerNorm: biased variance; eps inside the rsqrt
        var = ss * jnp.float32(1.0 / feature)
        inv = lax.rsqrt(var + jnp.float32(eps))                 # EUP slot
    return (diff * inv) * gamma + beta


def _ln_kernel(x_ref, gamma_ref, beta_ref, o_ref, *, eps, feature, torch_style):
    x = x_ref[...].astype(jnp.float32)
    gamma = gamma_ref[...].astype(jnp.float32)                  # (1, feature)
    beta = beta_ref[...].astype(jnp.float32)                    # (1, feature)
    y = _ln_body(x, gamma, beta, eps=eps, feature=feature, torch_style=torch_style)
    o_ref[...] = y.astype(o_ref.dtype)


def _add_ln_kernel(x_ref, r_ref, gamma_ref, beta_ref, o_ref, *, eps, feature, torch_style):
    # Fused residual add (SublayerConnection: layer_norm(x + sublayer(x)))
    x = x_ref[...].astype(jnp.float32) + r_ref[...].astype(jnp.float32)
    gamma = gamma_ref[...].astype(jnp.float32)
    beta = beta_ref[...].astype(jnp.float32)
    y = _ln_body(x, gamma, beta, eps=eps, feature=feature, torch_style=torch_style)
    o_ref[...] = y.astype(o_ref.dtype)


def layernorm_pallas(x, gamma, beta, *, eps=1e-6, torch_style=True,
                     residual=None, block_rows=512):
    """LayerNorm over the last axis of x. If `residual` is given, computes
    LN(x + residual) with the add fused into the kernel."""
    orig_shape = x.shape
    feature = orig_shape[-1]
    if torch_style:
        assert feature >= 2, "unbiased std needs at least 2 elements per row"

    rows = 1
    for d in orig_shape[:-1]:
        rows *= d
    x2 = x.reshape(rows, feature)                               # no-copy collapse
    r2 = None if residual is None else residual.reshape(rows, feature)

    # Size the row tile: big enough to amortize ~0.35 us/grid-step overhead,
    # small enough that double-buffered inputs + output stay well under the
    # scoped-VMEM default on every generation (incl. v7x 64 MiB).
    bytes_per_row = feature * x2.dtype.itemsize
    vmem_block_budget = 4 * 1024 * 1024
    block_rows = min(block_rows, max(16, vmem_block_budget // max(1, bytes_per_row)))
    block_rows = max(16, (block_rows // 16) * 16)               # sublane friendly (f32 & bf16)
    if rows <= block_rows:
        block_rows = rows                                       # single full block

    grid = (pl.cdiv(rows, block_rows),)                         # ragged tail -> masked stores

    gamma2 = gamma.reshape(1, feature)
    beta2 = beta.reshape(1, feature)

    row_spec = pl.BlockSpec((block_rows, feature), lambda i: (i, 0))
    vec_spec = pl.BlockSpec((1, feature), lambda i: (0, 0))      # resident across grid

    if residual is None:
        kernel = functools.partial(_ln_kernel, eps=eps, feature=feature,
                                   torch_style=torch_style)
        in_specs = [row_spec, vec_spec, vec_spec]
        operands = (x2, gamma2, beta2)
    else:
        kernel = functools.partial(_add_ln_kernel, eps=eps, feature=feature,
                                   torch_style=torch_style)
        in_specs = [row_spec, row_spec, vec_spec, vec_spec]
        operands = (x2, r2, gamma2, beta2)

    out = pl.pallas_call(
        kernel,
        out_shape=jax.ShapeDtypeStruct((rows, feature), x.dtype),
        grid_spec=pltpu.PrefetchScalarGridSpec(
            num_scalar_prefetch=0,
            grid=grid,
            in_specs=in_specs,
            out_specs=row_spec,
        ),
        compiler_params=pltpu.CompilerParams(
            dimension_semantics=("parallel",),                  # v7x: shard rows across TCs
        ),
    )(*operands)

    return out.reshape(orig_shape)


def layernorm_ref(x, gamma, beta, *, eps=1e-6, torch_style=True, residual=None):
    x32 = x.astype(jnp.float32)
    if residual is not None:
        x32 = x32 + residual.astype(jnp.float32)
    mean = jnp.mean(x32, axis=-1, keepdims=True)
    if torch_style:
        std = jnp.std(x32, axis=-1, keepdims=True, ddof=1)
        y = gamma * (x32 - mean) / (std + eps) + beta
    else:
        var = jnp.var(x32, axis=-1, keepdims=True)
        y = gamma * (x32 - mean) * lax.rsqrt(var + eps) + beta
    return y.astype(x.dtype)


# ----------------------------------------------------------------------------
# Region_Encoder forward pass in JAX (eval mode; dropout = identity)
# ----------------------------------------------------------------------------
def init_linear(key, d_in, d_out):
    kw, kb = jax.random.split(key)
    bound = 1.0 / (d_in ** 0.5)
    return {"w": jax.random.uniform(kw, (d_in, d_out), jnp.float32, -bound, bound),
            "b": jax.random.uniform(kb, (d_out,), jnp.float32, -bound, bound)}


def linear(p, x):
    return jnp.dot(x, p["w"]) + p["b"]


def init_mha(key, d_model):
    kq, kk, kv, ko = jax.random.split(key, 4)
    return {"q": init_linear(kq, d_model, d_model),
            "k": init_linear(kk, d_model, d_model),
            "v": init_linear(kv, d_model, d_model),
            "o": init_linear(ko, d_model, d_model)}


def multi_head_attention(p, x, head):
    b, L, d = x.shape
    dk = d // head
    q = linear(p["q"], x).reshape(b, L, head, dk).transpose(0, 2, 1, 3)
    k = linear(p["k"], x).reshape(b, L, head, dk).transpose(0, 2, 1, 3)
    v = linear(p["v"], x).reshape(b, L, head, dk).transpose(0, 2, 1, 3)
    scores = jnp.einsum("bhqd,bhkd->bhqk", q, k) / jnp.sqrt(jnp.float32(dk))
    attn = jax.nn.softmax(scores, axis=-1)
    ctx = jnp.einsum("bhqk,bhkd->bhqd", attn, v)
    ctx = ctx.transpose(0, 2, 1, 3).reshape(b, L, d)
    return linear(p["o"], ctx)


def init_ffn(key, d_model, d_ff):
    k1, k2 = jax.random.split(key)
    return {"ln_g": jnp.ones((d_model,), jnp.float32),
            "ln_b": jnp.zeros((d_model,), jnp.float32),
            "w1": init_linear(k1, d_model, d_ff),
            "w2": init_linear(k2, d_ff, d_model)}


def feed_forward(p, x, ln_fn):
    xn = ln_fn(x, p["ln_g"], p["ln_b"], eps=1e-6, torch_style=False)   # nn.LayerNorm
    inter = jax.nn.elu(linear(p["w1"], xn))
    return linear(p["w2"], inter)


def init_encoder_layer(key, d_model, d_ff):
    k1, k2 = jax.random.split(key)
    return {"attn": init_mha(k1, d_model),
            "ffn": init_ffn(k2, d_model, d_ff),
            "sub1_g": jnp.ones((d_model,), jnp.float32),
            "sub1_b": jnp.zeros((d_model,), jnp.float32),
            "sub2_g": jnp.ones((d_model,), jnp.float32),
            "sub2_b": jnp.zeros((d_model,), jnp.float32)}


def encoder_layer(p, x, head, ln_fn):
    attn_out = multi_head_attention(p["attn"], x, head)
    first_x = ln_fn(x, p["sub1_g"], p["sub1_b"], eps=1e-6,
                    torch_style=True, residual=attn_out)               # custom LayerNorm
    ff_out = feed_forward(p["ffn"], first_x, ln_fn)
    return ln_fn(first_x, p["sub2_g"], p["sub2_b"], eps=1e-6,
                 torch_style=True, residual=ff_out)


def encoder(layer_params_list, x, head, ln_fn):
    for p in layer_params_list:
        x = encoder_layer(p, x, head, ln_fn)
    return x


def init_se(key, n_nodes):
    k1, k2 = jax.random.split(key)
    return {"l1": init_linear(k1, n_nodes, n_nodes),
            "l2": init_linear(k2, n_nodes, n_nodes)}


def squeeze_excitation(p, x):
    x_f = jnp.mean(x, axis=-1)                                         # (b, n_nodes)
    x_f = jax.nn.sigmoid(linear(p["l1"], x_f))
    x_f = jax.nn.sigmoid(linear(p["l2"], x_f))
    return x * x_f[..., None]


def init_region_encoder(key, spatial_dict, temporal_dict, d_model_dict, d_ff):
    ks = jax.random.split(key, 8)
    s_d, t_d = d_model_dict["spatial"], d_model_dict["temporal"]
    s_keys = jax.random.split(ks[0], len(spatial_dict))
    t_keys = jax.random.split(ks[1], len(temporal_dict))
    se_s_keys = jax.random.split(ks[2], len(spatial_dict))
    se_t_keys = jax.random.split(ks[3], len(temporal_dict))
    R_s, R_t = len(spatial_dict), len(temporal_dict)
    return {
        # one EncoderLayer per region; the module deepcopies it n_layers times,
        # so all layers of a region share the same initial weights
        "s_layer": {i: init_encoder_layer(s_keys[n], s_d, d_ff)
                    for n, i in enumerate(spatial_dict)},
        "t_layer": {i: init_encoder_layer(t_keys[n], t_d, d_ff)
                    for n, i in enumerate(temporal_dict)},
        "s_se": {i: init_se(se_s_keys[n], len(spatial_dict[i]))
                 for n, i in enumerate(spatial_dict)},
        "t_se": {i: init_se(se_t_keys[n], len(temporal_dict[i]))
                 for n, i in enumerate(temporal_dict)},
        "lin1_s": init_linear(ks[4], R_s, R_s),
        "lin2_s": init_linear(ks[5], R_s, R_s),
        "lin1_t": init_linear(ks[6], R_t, R_t),
        "lin2_t": init_linear(ks[7], R_t, R_t),
    }


def region_encoder_forward(params, x, spatial_dict, temporal_dict,
                           n_layers, head_dict, ln_fn):
    x_t = jnp.transpose(x, (0, 2, 1))

    s_encoded = []
    for i in spatial_dict:
        region = x[:, jnp.asarray(spatial_dict[i]), :]
        layers = [params["s_layer"][i]] * n_layers
        s_encoded.append(encoder(layers, region, head_dict["spatial"], ln_fn))

    t_encoded = []
    for i in temporal_dict:
        region = x_t[:, jnp.asarray(temporal_dict[i]), :]
        layers = [params["t_layer"][i]] * n_layers
        t_encoded.append(encoder(layers, region, head_dict["temporal"], ln_fn))

    # spatial region-mixing weights
    reps = []
    for n, i in enumerate(spatial_dict):
        se = squeeze_excitation(params["s_se"][i], s_encoded[n])
        reps.append(jnp.mean(se, axis=(1, 2))[:, None])                # (b, 1)
    region_se_x = jnp.concatenate(reps, axis=1)                        # (b, R_s)
    region_se_x = jax.nn.softmax(linear(params["lin1_s"], region_se_x), axis=1)
    region_se_x = jax.nn.softmax(linear(params["lin2_s"], region_se_x), axis=1)
    spatial_ret = jnp.concatenate(
        [region_se_x[:, n][:, None, None] * s_encoded[n] for n in range(len(s_encoded))],
        axis=1)

    # temporal region-mixing weights
    reps_t = []
    for n, i in enumerate(temporal_dict):
        te = squeeze_excitation(params["t_se"][i], t_encoded[n])
        reps_t.append(jnp.mean(te, axis=(1, 2))[:, None])
    region_te_x = jnp.concatenate(reps_t, axis=1)
    region_te_x = jax.nn.softmax(linear(params["lin1_t"], region_te_x), axis=1)
    region_te_x = jax.nn.softmax(linear(params["lin2_t"], region_te_x), axis=1)
    temporal_ret = jnp.concatenate(
        [region_te_x[:, n][:, None, None] * t_encoded[n] for n in range(len(t_encoded))],
        axis=1)
    temporal_ret = jnp.transpose(temporal_ret, (0, 2, 1))

    return (temporal_ret + spatial_ret) / 2.0


if __name__ == "__main__":
    key = jax.random.PRNGKey(0)
    k_x, k_p, k_a, k_b = jax.random.split(key, 4)

    # ---------------- standalone kernel checks ----------------
    # torch-style LN, ragged rows + small forced tile (masked-tail path)
    xa = jax.random.normal(k_a, (3, 37, 64), dtype=jnp.float32)
    ga = 1.0 + 0.1 * jnp.arange(64, dtype=jnp.float32)
    ba = 0.05 * jnp.arange(64, dtype=jnp.float32)
    oa = jax.block_until_ready(layernorm_pallas(xa, ga, ba, eps=1e-6,
                                                torch_style=True, block_rows=16))
    ra = layernorm_ref(xa, ga, ba, eps=1e-6, torch_style=True)
    assert jnp.allclose(oa, ra, atol=1e-4, rtol=1e-4), float(jnp.max(jnp.abs(oa - ra)))

    # nn.LayerNorm style with fused residual add
    xb = jax.random.normal(k_b, (2, 8, 128), dtype=jnp.float32)
    rb = jax.random.normal(jax.random.PRNGKey(7), (2, 8, 128), dtype=jnp.float32)
    gb = jnp.ones((128,), jnp.float32)
    bb = jnp.zeros((128,), jnp.float32)
    ob = jax.block_until_ready(layernorm_pallas(xb, gb, bb, eps=1e-6,
                                                torch_style=False, residual=rb))
    rrb = layernorm_ref(xb, gb, bb, eps=1e-6, torch_style=False, residual=rb)
    assert jnp.allclose(ob, rrb, atol=1e-4, rtol=1e-4), float(jnp.max(jnp.abs(ob - rrb)))

    # ---------------- full Region_Encoder forward ----------------
    batch = 2
    n_nodes = 8                     # electrode / node axis
    seq_len = 16                    # time axis
    spatial_dict = {0: [0, 1, 2], 1: [3, 4, 5], 2: [6, 7]}           # partitions nodes
    temporal_dict = {0: list(range(0, 8)), 1: list(range(8, 16))}    # partitions time
    d_model_dict = {"spatial": seq_len, "temporal": n_nodes}
    head_dict = {"spatial": 4, "temporal": 2}
    d_ff = 32
    n_layers = 2

    x = jax.random.normal(k_x, (batch, n_nodes, seq_len), dtype=jnp.float32)
    params = init_region_encoder(k_p, spatial_dict, temporal_dict, d_model_dict, d_ff)

    fwd_pallas = jax.jit(lambda p, xx: region_encoder_forward(
        p, xx, spatial_dict, temporal_dict, n_layers, head_dict, layernorm_pallas))
    fwd_ref = jax.jit(lambda p, xx: region_encoder_forward(
        p, xx, spatial_dict, temporal_dict, n_layers, head_dict, layernorm_ref))

    out = jax.block_until_ready(fwd_pallas(params, x))
    ref = jax.block_until_ready(fwd_ref(params, x))
    assert out.shape == (batch, n_nodes, seq_len)
    assert jnp.allclose(out, ref, atol=1e-4, rtol=1e-4), float(jnp.max(jnp.abs(out - ref)))

    print("KERNEL_OK")
</pallas_src>

<mosaic_0001>
module attributes {stable_mosaic.version = 11 : i64} {
  func.func @_ln_kernel(%arg0: i32, %arg1: memref<16x64xf32, #tpu.memory_space<vmem>>, %arg2: memref<1x64xf32, #tpu.memory_space<vmem>>, %arg3: memref<1x64xf32, #tpu.memory_space<vmem>>, %arg4: memref<16x64xf32, #tpu.memory_space<vmem>>) attributes {dimension_semantics = [#tpu.dimension_semantics<parallel>], iteration_bounds = array<i64: 7>, scalar_prefetch = 0 : i64, scratch_operands = 0 : i64, tpu.core_type = #tpu.core_type<tc>, window_params = [{transform_indices = @transform_0, window_bounds = array<i64: 16, 64>}, {pipeline_mode = #tpu.pipeline_mode<synchronous>, transform_indices = @transform_1, window_bounds = array<i64: 1, 64>}, {pipeline_mode = #tpu.pipeline_mode<synchronous>, transform_indices = @transform_2, window_bounds = array<i64: 1, 64>}, {transform_indices = @transform_3, window_bounds = array<i64: 16, 64>}]} {
    %c0 = arith.constant 0 : index
    %c0_0 = arith.constant 0 : index
    %0 = vector.load %arg1[%c0, %c0_0] : memref<16x64xf32, #tpu.memory_space<vmem>>, vector<16x64xf32>
    %c0_1 = arith.constant 0 : index
    %c0_2 = arith.constant 0 : index
    %1 = vector.load %arg2[%c0_1, %c0_2] : memref<1x64xf32, #tpu.memory_space<vmem>>, vector<1x64xf32>
    %c0_3 = arith.constant 0 : index
    %c0_4 = arith.constant 0 : index
    %2 = vector.load %arg3[%c0_3, %c0_4] : memref<1x64xf32, #tpu.memory_space<vmem>>, vector<1x64xf32>
    %cst = arith.constant dense<0.000000e+00> : vector<16xf32>
    %3 = vector.multi_reduction <add>, %0, %cst [1] : vector<16x64xf32> to vector<16xf32>
    %4 = vector.shape_cast %3 : vector<16xf32> to vector<16x1xf32>
    %cst_5 = arith.constant 6.400000e+01 : f32
    %5 = vector.broadcast %cst_5 : f32 to vector<16x1xf32>
    %6 = arith.divf %4, %5 : vector<16x1xf32>
    %7 = vector.broadcast %6 : vector<16x1xf32> to vector<16x64xf32>
    %8 = arith.subf %0, %7 : vector<16x64xf32>
    %9 = arith.mulf %8, %8 : vector<16x64xf32>
    %cst_6 = arith.constant dense<0.000000e+00> : vector<16xf32>
    %10 = vector.multi_reduction <add>, %9, %cst_6 [1] : vector<16x64xf32> to vector<16xf32>
    %11 = vector.shape_cast %10 : vector<16xf32> to vector<16x1xf32>
    %cst_7 = arith.constant 0.0158730168 : f32
    %12 = vector.broadcast %cst_7 : f32 to vector<16x1xf32>
    %13 = arith.mulf %11, %12 : vector<16x1xf32>
    %14 = math.sqrt %13 : vector<16x1xf32>
    %cst_8 = arith.constant 9.99999997E-7 : f32
    %15 = vector.broadcast %cst_8 : f32 to vector<16x1xf32>
    %16 = arith.addf %14, %15 : vector<16x1xf32>
    %17 = tpu.reciprocal %16 {approx = true} : vector<16x1xf32> -> vector<16x1xf32>
    %18 = arith.mulf %16, %17 : vector<16x1xf32>
    %cst_9 = arith.constant 2.000000e+00 : f32
    %19 = vector.broadcast %cst_9 : f32 to vector<16x1xf32>
    %20 = arith.subf %19, %18 : vector<16x1xf32>
    %21 = arith.mulf %17, %20 : vector<16x1xf32>
    %22 = vector.broadcast %21 : vector<16x1xf32> to vector<16x64xf32>
    %23 = arith.mulf %8, %22 : vector<16x64xf32>
    %24 = vector.broadcast %1 : vector<1x64xf32> to vector<16x64xf32>
    %25 = arith.mulf %23, %24 : vector<16x64xf32>
    %26 = vector.broadcast %2 : vector<1x64xf32> to vector<16x64xf32>
    %27 = arith.addf %25, %26 : vector<16x64xf32>
    %c0_10 = arith.constant 0 : index
    %c0_11 = arith.constant 0 : index
    %28 = vector.load %arg4[%c0_10, %c0_11] : memref<16x64xf32, #tpu.memory_space<vmem>>, vector<16x64xf32>
    tpu.vector_store %arg4[%c0_10, %c0_11], %27 {strides = array<i32>} : memref<16x64xf32, #tpu.memory_space<vmem>>, vector<16x64xf32>,
    return
  }
  func.func @transform_0(%arg0: i32) -> (i32, i32) {
    %c0_i32 = arith.constant 0 : i32
    %c0_i32_0 = arith.constant 0 : i32
    return %arg0, %c0_i32 : i32, i32
  }
  func.func @transform_1(%arg0: i32) -> (i32, i32) {
    %c0_i32 = arith.constant 0 : i32
    %c0_i32_0 = arith.constant 0 : i32
    %c0_i32_1 = arith.constant 0 : i32
    return %c0_i32, %c0_i32_0 : i32, i32
  }
  func.func @transform_2(%arg0: i32) -> (i32, i32) {
    %c0_i32 = arith.constant 0 : i32
    %c0_i32_0 = arith.constant 0 : i32
    %c0_i32_1 = arith.constant 0 : i32
    return %c0_i32, %c0_i32_0 : i32, i32
  }
  func.func @transform_3(%arg0: i32) -> (i32, i32) {
    %c0_i32 = arith.constant 0 : i32
    %c0_i32_0 = arith.constant 0 : i32
    return %arg0, %c0_i32 : i32, i32
  }
}

</mosaic_0001>

<llo_original>
// kernel: tpu_custom_call.1
$region0: #{tpu_custom_call.1}
  #allocation0 [shape = 'u32[]', space=smem, size = 0x4, offset = 0x4, fixed_abs, tag = 'smem constant byte address 0x4 - core index']
  #allocation1 [shape = 'u32[72,128]{1,0:T(1,128)}', space=vmem, size = 0x9000, scoped, tag = 'internal scratch']
  %s0 = inlined_call_operand.vmem [shape: f32[111,64], index: 0, kind: input, shape index: {}]
  %s1 = inlined_call_operand.vmem [shape: f32[1,64], index: 1, kind: input, shape index: {}]
  %s2 = inlined_call_operand.vmem [shape: f32[1,64], index: 2, kind: input, shape index: {}]
  %s3 = inlined_call_operand.vmem [shape: f32[111,64], index: 3, kind: output, shape index: {}]
  %s4 = sld [smem:[#allocation0]]
  $region45: #{tpu_custom_call.1} parent=0
    _
  %s6 = ssub.s32 1, %s4
  %s7 = scalar_select 0, %s6, %s4
  loop: start=0, step=1, limit=9
  $region2: #{tpu_custom_call.1} parent=0 // loop_pre_header
    _
  $region3: #{tpu_custom_call.1} parent=0 // loop_header
    %s9 = sphi 0, %s13
    %p10 = scmp.ge.s32.totalorder %s9, 9
    %s19 = sphi 0, %s21
    %s22 = sphi 0, %s19
    %s23 = sphi 0, %s22
    %s39 = sphi 0, %s23
    %s43 = sphi 0, %s43
    %s45 = sphi 0, %s43
    %s46 = sphi 0, %s45
    %s60 = sphi 0, %s46
    %s64 = sphi 0, %s64
    %s66 = sphi 0, %s64
    %s67 = sphi 0, %s66
    %s81 = sphi 0, %s67
    %s87 = sphi 0, %s89
    %s90 = sphi 0, %s87
    %s91 = sphi 0, %s90
    %s107 = sphi 0, %s91
  $region4: #{tpu_custom_call.1} parent=0 // loop_header_branch
    %12 = sbr.rel (%p10) target = $region8
  $region5: #{tpu_custom_call.1} parent=0 // loop_body
    %s14 = ssub.s32 %s9, 1
    %s15 = ssub.s32 %s9, 2
    %s16 = sadd.s32 %s9, 1
    %s17 = ssub.s32 %s9, %s16
    %p18 = scmp.eq.s32.totalorder %s17, 0
    %s20 = sadd.s32 %s19, 1
    %s21 = scalar_select %p18, %s19, %s20
    %p24 = pneg %p18
    %p25 = scmp.eq.s32.totalorder %s9, 6
    %p26 = por %p24, %p25
    %p27 = scmp.ne.s32.totalorder %s19, %s22
    %p28 = scmp.eq.s32.totalorder %s9, 0
    %p29 = por %p27, %p28
    %p30 = scmp.ne.s32.totalorder %s19, %s22
    %p31 = scmp.eq.s32.totalorder %s14, 6
    %p32 = por %p30, %p31
    %p33 = scmp.ne.s32.totalorder %s22, %s23
    %p34 = scmp.eq.s32.totalorder %s14, 0
    %p35 = por %p33, %p34
    %p36 = scmp.ne.s32.totalorder %s22, %s23
    %p37 = scmp.eq.s32.totalorder %s15, 6
    %p38 = por %p36, %p37
    %p40 = scmp.ne.s32.totalorder %s23, %s39
    %p41 = scmp.eq.s32.totalorder %s15, 0
    %p42 = por %p40, %p41
    %s44 = sadd.s32 %s43, 1
    %p47 = scmp.eq.s32.totalorder %s9, 6
    %p48 = scmp.ne.s32.totalorder %s43, %s45
    %p49 = scmp.eq.s32.totalorder %s9, 0
    %p50 = por %p48, %p49
    %p51 = scmp.ne.s32.totalorder %s43, %s45
    %p52 = scmp.eq.s32.totalorder %s14, 6
    %p53 = por %p51, %p52
    %p54 = scmp.ne.s32.totalorder %s45, %s46
    %p55 = scmp.eq.s32.totalorder %s14, 0
    %p56 = por %p54, %p55
    %p57 = scmp.ne.s32.totalorder %s45, %s46
    %p58 = scmp.eq.s32.totalorder %s15, 6
    %p59 = por %p57, %p58
    %p61 = scmp.ne.s32.totalorder %s46, %s60
    %p62 = scmp.eq.s32.totalorder %s15, 0
    %p63 = por %p61, %p62
    %s65 = sadd.s32 %s64, 1
    %p68 = scmp.eq.s32.totalorder %s9, 6
    %p69 = scmp.ne.s32.totalorder %s64, %s66
    %p70 = scmp.eq.s32.totalorder %s9, 0
    %p71 = por %p69, %p70
    %p72 = scmp.ne.s32.totalorder %s64, %s66
    %p73 = scmp.eq.s32.totalorder %s14, 6
    %p74 = por %p72, %p73
    %p75 = scmp.ne.s32.totalorder %s66, %s67
    %p76 = scmp.eq.s32.totalorder %s14, 0
    %p77 = por %p75, %p76
    %p78 = scmp.ne.s32.totalorder %s66, %s67
    %p79 = scmp.eq.s32.totalorder %s15, 6
    %p80 = por %p78, %p79
    %p82 = scmp.ne.s32.totalorder %s67, %s81
    %p83 = scmp.eq.s32.totalorder %s15, 0
    %p84 = por %p82, %p83
    %s85 = ssub.s32 %s9, %s16
    %p86 = scmp.eq.s32.totalorder %s85, 0
    %s88 = sadd.s32 %s87, 1
    %s89 = scalar_select %p86, %s87, %s88
    %p92 = pneg %p86
    %p93 = scmp.eq.s32.totalorder %s9, 6
    %p94 = por %p92, %p93
    %p95 = scmp.ne.s32.totalorder %s87, %s90
    %p96 = scmp.eq.s32.totalorder %s9, 0
    %p97 = por %p95, %p96
    %p98 = scmp.ne.s32.totalorder %s87, %s90
    %p99 = scmp.eq.s32.totalorder %s14, 6
    %p100 = por %p98, %p99
    %p101 = scmp.ne.s32.totalorder %s90, %s91
    %p102 = scmp.eq.s32.totalorder %s14, 0
    %p103 = por %p101, %p102
    %p104 = scmp.ne.s32.totalorder %s90, %s91
    %p105 = scmp.eq.s32.totalorder %s15, 6
    %p106 = por %p104, %p105
    %p108 = scmp.ne.s32.totalorder %s91, %s107
    %p109 = scmp.eq.s32.totalorder %s15, 0
    %p110 = por %p108, %p109
    %p111 = scmp.le.s32.totalorder 1, %s9
    %p112 = scmp.lt.s32.totalorder %s9, 8
    %p113 = pnand %p111, %p112
    %p114 = pneg %p113
    // Predicated region
    $region9: #{tpu_custom_call.1} parent=5 // pred_check
      _
    $region10: #{tpu_custom_call.1} parent=5 // pred_check_branch
      %116 = sbr.rel (%p113) target = $region12
    $region11: #{tpu_custom_call.1} parent=5 // pred_region
      %s117 = ssub.s32 %s9, 1
      // Predicated region
      $region13: #{tpu_custom_call.1} parent=11 // pred_check
        %p118 = pneg %p56
      $region14: #{tpu_custom_call.1} parent=11 // pred_check_branch
        %120 = sbr.rel (%p118) target = $region16
      $region15: #{tpu_custom_call.1} parent=11 // pred_region
        _
      $region16: #{tpu_custom_call.1} parent=11 // pred_fallthru
        _
      // Predicated region
      $region17: #{tpu_custom_call.1} parent=11 // pred_check
        %p121 = pneg %p77
      $region18: #{tpu_custom_call.1} parent=11 // pred_check_branch
        %123 = sbr.rel (%p121) target = $region20
      $region19: #{tpu_custom_call.1} parent=11 // pred_region
        _
      $region20: #{tpu_custom_call.1} parent=11 // pred_fallthru
        _
    $region12: #{tpu_custom_call.1} parent=5 // pred_fallthru
      _
    %p124 = scmp.lt.s32.totalorder %s9, 7
    // Predicated region
    $region21: #{tpu_custom_call.1} parent=5 // pred_check
      %p125 = pneg %p124
    $region22: #{tpu_custom_call.1} parent=5 // pred_check_branch
      %127 = sbr.rel (%p125) target = $region24
    $region23: #{tpu_custom_call.1} parent=5 // pred_region
      // Predicated region
      $region25: #{tpu_custom_call.1} parent=23 // pred_check
        %p128 = pneg %p29
      $region26: #{tpu_custom_call.1} parent=23 // pred_check_branch
        %130 = sbr.rel (%p128) target = $region28
      $region27: #{tpu_custom_call.1} parent=23 // pred_region
        %s131 = smul.u32 2, %s9
        %p132 = scmp.lt.s32.totalorder %s131, 13
        %s133 = scalar_select %p132, %s131, 13
        %s134 = smul.addr %s133, 8
        %s135 = scalar_lea.vmem %s0, %s134
        %s136 = smul.u32 2, %s9
      $region28: #{tpu_custom_call.1} parent=23 // pred_fallthru
        _
    $region24: #{tpu_custom_call.1} parent=5 // pred_fallthru
      _
    %p137 = scmp.le.s32.totalorder 1, %s9
    %p138 = scmp.lt.s32.totalorder %s9, 8
    %p139 = pnand %p137, %p138
    %p140 = pneg %p139
    // Predicated region
    $region29: #{tpu_custom_call.1} parent=5 // pred_check
      _
    $region30: #{tpu_custom_call.1} parent=5 // pred_check_branch
      %142 = sbr.rel (%p139) target = $region32
    $region31: #{tpu_custom_call.1} parent=5 // pred_region
      %s143 = ssub.s32 %s9, 1
      %s144 = smul.u32 2, %s14
      %p145 = scmp.lt.s32.totalorder %s144, 13
      %s146 = scalar_select %p145, %s144, 13
      %s147 = smul.addr %s146, 8
      %s148 = scalar_lea.vmem %s0, %s147
      %p149 = pneg %p35
      %p150 = pneg %p32
      %p151 = pneg %p56
      %p152 = pneg %p53
      %p153 = pneg %p77
      %p154 = pneg %p74
      %p155 = pneg %p103
      %p156 = pneg %p100
      %s157 = smul.u32 2, %s14
      %p158 = scmp.lt.s32.totalorder %s157, 13
      %s159 = scalar_select %p158, %s157, 13
      %s160 = smul.addr %s159, 8
      %s161 = scalar_lea.vmem %s3, %s160
      %s162 = smul.u32 2, %s14
      %p163 = scmp.lt.s32.totalorder %s162, 13
      %s164 = scalar_select %p163, %s162, 13
      %s165 = smul.addr %s164, 8
      %s166 = scalar_lea.vmem %s0, %s165
      %s167 = smul.u32 2, %s14
      %s168 = smul.u32 2, %s14
      %p169 = scmp.lt.s32.totalorder %s168, 13
      %s170 = scalar_select %p169, %s168, 13
      %s171 = smul.addr %s170, 8
      %s172 = scalar_lea.vmem %s3, %s171
      %s173 = smul.u32 2, %s14
      %v174 = vld [vmem:[%s166] sm:$0xff]
      %v175 = vld [vmem:[%s166 + $0x8] sm:$0xff]
      %v176 = vld [vmem:[%s1] sm:$0x1]
      %v177 = vld [vmem:[%s2] sm:$0x1]
      %vm178 = vcmask 523264
      %v179 = vsel %vm178, %v174, 0.0
      %180 = vadd.xlane.f32.xlu0 %v179
      %v181 = vpop.xlane.xlu0 %180
      %v182 = vsel %vm178, %v175, 0.0
      %183 = vadd.xlane.f32.xlu0 %v182
      %v184 = vpop.xlane.xlu0 %183
      %v185 = vrcp.pop 64.0
      %v186 = vmul.f32 64.0, %v185
      %v187 = vsub.f32 1.0, %v186
      %v188 = vmul.f32 %v185, %v187
      %v189 = vadd.f32 %v185, %v188
      %vm190 = vweird.f32 %v185
      %v191 = vsel %vm190, %v185, %v189
      %v192 = vmul.f32 %v181, %v191
      %v193 = vmul.f32 %v184, %v191
      %v194 = vsub.f32 %v174, %v192
      %v195 = vsub.f32 %v175, %v193
      %v196 = vmul.f32 %v194, %v194
      %v197 = vmul.f32 %v195, %v195
      %v198 = vsel %vm178, %v196, 0.0
      %199 = vadd.xlane.f32.xlu0 %v198
      %v200 = vpop.xlane.xlu0 %199
      %v201 = vsel %vm178, %v197, 0.0
      %202 = vadd.xlane.f32.xlu0 %v201
      %v203 = vpop.xlane.xlu0 %202
      %v204 = vmul.f32 %v200, 0.015873017
      %v205 = vmul.f32 %v203, 0.015873017
      %v206 = vrsqrt.pop %v204
      %v207 = vmul.f32 %v206, %v204
      %v208 = vmul.f32 %v207, %v206
      %v209 = vmul.f32 0.5, %v208
      %v210 = vsub.f32 1.5, %v209
      %v211 = vmul.f32 %v206, %v210
      %v212 = vmul.f32 %v204, %v211
      %vm213 = vcmp.eq.f32.partialorder %v204, inf
      %v214 = vsel %vm213, %v204, %v212
      %vm215 = vcmp.eq.f32.partialorder %v204, 0.0
      %v216 = vand.u32 %v204, 2147483648
      %v217 = vsel %vm215, %v216, %v214
      %v218 = vrsqrt.pop %v205
      %v219 = vmul.f32 %v218, %v205
      %v220 = vmul.f32 %v219, %v218
      %v221 = vmul.f32 0.5, %v220
      %v222 = vsub.f32 1.5, %v221
      %v223 = vmul.f32 %v218, %v222
      %v224 = vmul.f32 %v205, %v223
      %vm225 = vcmp.eq.f32.partialorder %v205, inf
      %v226 = vsel %vm225, %v205, %v224
      %vm227 = vcmp.eq.f32.partialorder %v205, 0.0
      %v228 = vand.u32 %v205, 2147483648
      %v229 = vsel %vm227, %v228, %v226
      %v230 = vadd.f32 %v217, 1e-06
      %v231 = vadd.f32 %v229, 1e-06
      %v232 = vrcp.pop %v230
      %v233 = vrcp.pop %v231
      %v234 = vmul.f32 %v230, %v232
      %v235 = vmul.f32 %v231, %v233
      %v236 = vsub.f32 2.0, %v234
      %v237 = vsub.f32 2.0, %v235
      %v238 = vmul.f32 %v232, %v236
      %v239 = vmul.f32 %v233, %v237
      %v240 = vmul.f32 %v194, %v238
      %v241 = vmul.f32 %v195, %v239
      %v243 = vperm.slane %v176, 0
      %v245 = vmul.f32 %v240, %v243
      %v246 = vmul.f32 %v241, %v243
      %v248 = vperm.slane %v177, 0
      %v250 = vadd.f32 %v245, %v248
      %v251 = vadd.f32 %v246, %v248
      %252 = vst.msk [vmem:[%s172] sm:$0xff] %vm178, %v250
      %253 = vst.msk [vmem:[%s172 + $0x8] sm:$0xff] %vm178, %v251
      %s254 = smul.u32 2, %s14
      %p255 = scmp.lt.s32.totalorder %s254, 13
      %s256 = scalar_select %p255, %s254, 13
      %s257 = smul.addr %s256, 8
      %s258 = scalar_lea.vmem %s3, %s257
      // Predicated region
      $region33: #{tpu_custom_call.1} parent=31 // pred_check
        %p259 = pneg %p100
      $region34: #{tpu_custom_call.1} parent=31 // pred_check_branch
        %261 = sbr.rel (%p259) target = $region36
      $region35: #{tpu_custom_call.1} parent=31 // pred_region
        %s262 = smul.u32 2, %s14
      $region36: #{tpu_custom_call.1} parent=31 // pred_fallthru
        _
    $region32: #{tpu_custom_call.1} parent=5 // pred_fallthru
      _
    %p263 = scmp.le.s32.totalorder 2, %s9
    // Predicated region
    $region37: #{tpu_custom_call.1} parent=5 // pred_check
      %p264 = pneg %p263
    $region38: #{tpu_custom_call.1} parent=5 // pred_check_branch
      %266 = sbr.rel (%p264) target = $region40
    $region39: #{tpu_custom_call.1} parent=5 // pred_region
      %s267 = ssub.s32 %s9, 2
      // Predicated region
      $region41: #{tpu_custom_call.1} parent=39 // pred_check
        %p268 = pneg %p106
      $region42: #{tpu_custom_call.1} parent=39 // pred_check_branch
        %270 = sbr.rel (%p268) target = $region44
      $region43: #{tpu_custom_call.1} parent=39 // pred_region
        %s271 = smul.u32 2, %s15
        %p272 = scmp.lt.s32.totalorder %s271, 13
        %s273 = scalar_select %p272, %s271, 13
        %s274 = smul.addr %s273, 8
        %s275 = scalar_lea.vmem %s3, %s274
      $region44: #{tpu_custom_call.1} parent=39 // pred_fallthru
        _
    $region40: #{tpu_custom_call.1} parent=5 // pred_fallthru
      _
  $region6: #{tpu_custom_call.1} parent=0 // loop_footer
    %s13 = sadd.s32 1, %s9
  $region7: #{tpu_custom_call.1} parent=0 // loop_footer_branch
    %8 = sbr.rel target = $region3
  $region8: #{tpu_custom_call.1} parent=0 // loop_exit
    _

</llo_original>
